<compile_context>
chip_gen: v5e
topology: v5e:2x2
jax: 0.10.0
libtpu: 0.0.40
codegen_flags: <defaults>
</compile_context>

<pallas_src>
import functools

import jax
import jax.numpy as jnp
from jax.experimental import pallas as pl
from jax.experimental.pallas import tpu as pltpu


def dblock_relu_kernel(x_ref, w1_ref, b1_ref, w2_ref, b2_ref, wh_ref, bh_ref,
                       out_ref, *, o_size):
    # fc1 + relu  (accumulate in f32; bias add / relu in f32)
    t = jnp.dot(x_ref[...], w1_ref[...], preferred_element_type=jnp.float32)
    t = jnp.maximum(t + b1_ref[...], 0.0)
    # fc2 + relu
    t = t.astype(w2_ref.dtype)           # keep bf16 MXU path when weights are bf16
    t = jnp.dot(t, w2_ref[...], preferred_element_type=jnp.float32)
    t = jnp.maximum(t + b2_ref[...], 0.0)
    # fused head: [fc_mu | fc_logsigma] in one matmul
    t = t.astype(wh_ref.dtype)
    head = jnp.dot(t, wh_ref[...], preferred_element_type=jnp.float32) + bh_ref[...]
    # relu only on the logsigma half (lanes >= o_size); mu half passes through
    lane = jax.lax.broadcasted_iota(jnp.int32, head.shape, 1)
    head = jnp.where(lane < o_size, head, jnp.maximum(head, 0.0))
    out_ref[...] = head.astype(out_ref.dtype)


def dblock_relu(x, tpu_params, *, block_b=None, out_dtype=jnp.float32):
    """x: (B, input_size). tpu_params: output of fuse_and_pad_params().

    Returns (mu, logsigma), each (B, output_size)."""
    B, K = x.shape
    w1, b1 = tpu_params["w1"], tpu_params["b1"]
    w2, b2 = tpu_params["w2"], tpu_params["b2"]
    wh, bh = tpu_params["w_head"], tpu_params["b_head"]
    O2 = wh.shape[1]
    O = O2 // 2

    # Match the weight compute dtype (bf16 fast path on v6e/v7x).
    if x.dtype != w1.dtype:
        x = x.astype(w1.dtype)

    if block_b is None:
        # 256-row tiles: big enough to amortize the ~0.35us/step grid overhead,
        # small enough that multiple tiles exist at moderate batch so the DMA
        # pipeline and v7x megacore sharding engage.
        block_b = min(256, B)

    grid = (pl.cdiv(B, block_b),)

    x_spec = pl.BlockSpec((block_b, K), lambda i: (i, 0))
    # Replicated params: constant block index -> resident in VMEM across steps.
    rep = lambda arr: pl.BlockSpec(arr.shape, lambda i: (0, 0))
    out_spec = pl.BlockSpec((block_b, O2), lambda i: (i, 0))

    out = pl.pallas_call(
        functools.partial(dblock_relu_kernel, o_size=O),
        out_shape=jax.ShapeDtypeStruct((B, O2), out_dtype),
        grid_spec=pltpu.PrefetchScalarGridSpec(
            num_scalar_prefetch=0,
            grid=grid,
            in_specs=[
                x_spec,
                rep(w1), rep(b1),
                rep(w2), rep(b2),
                rep(wh), rep(bh),
            ],
            out_specs=out_spec,
        ),
        compiler_params=pltpu.CompilerParams(
            dimension_semantics=("parallel",)),
    )(x, w1, b1, w2, b2, wh, bh)

    return out[:, :O], out[:, O:]


def init_params(key, input_size, hidden_size, output_size, dtype=jnp.float32):
    """Deterministic init mimicking nn.Linear (uniform +/-1/sqrt(fan_in)).
    Weights stored as (in_features, out_features); biases as (1, out_features)."""
    def linear(k, fan_in, fan_out):
        kw, kb = jax.random.split(k)
        bound = 1.0 / jnp.sqrt(jnp.asarray(fan_in, dtype))
        w = jax.random.uniform(kw, (fan_in, fan_out), dtype, -bound, bound)
        b = jax.random.uniform(kb, (1, fan_out), dtype, -bound, bound)
        return w, b

    k1, k2, k3, k4 = jax.random.split(key, 4)
    w1, b1 = linear(k1, input_size, hidden_size)
    w2, b2 = linear(k2, hidden_size, hidden_size)
    wmu, bmu = linear(k3, hidden_size, output_size)
    wls, bls = linear(k4, hidden_size, output_size)
    return dict(w1=w1, b1=b1, w2=w2, b2=b2, wmu=wmu, bmu=bmu, wls=wls, bls=bls)


def fuse_and_pad_params(p, *, lane=128, compute_dtype=None):
    """One-time TPU layout prep:
      - zero-pad the hidden dim to a multiple of `lane` (inert: zero weights/bias)
      - fuse the mu/logsigma head into a single (H_pad, 2*O) weight + (1, 2*O) bias
      - optionally cast weights to `compute_dtype` (e.g. bf16); biases stay f32."""
    H = p["w1"].shape[1]
    Hp = ((H + lane - 1) // lane) * lane
    ph = Hp - H
    w1 = jnp.pad(p["w1"], ((0, 0), (0, ph)))
    b1 = jnp.pad(p["b1"], ((0, 0), (0, ph)))
    w2 = jnp.pad(p["w2"], ((0, ph), (0, ph)))
    b2 = jnp.pad(p["b2"], ((0, 0), (0, ph)))
    w_head = jnp.pad(jnp.concatenate([p["wmu"], p["wls"]], axis=1), ((0, ph), (0, 0)))
    b_head = jnp.concatenate([p["bmu"], p["bls"]], axis=1)
    if compute_dtype is not None:
        w1 = w1.astype(compute_dtype)
        w2 = w2.astype(compute_dtype)
        w_head = w_head.astype(compute_dtype)
    return dict(w1=w1, b1=b1, w2=w2, b2=b2, w_head=w_head, b_head=b_head)


def dblock_relu_ref(x, p):
    t = jax.nn.relu(x @ p["w1"] + p["b1"])
    t = jax.nn.relu(t @ p["w2"] + p["b2"])
    mu = t @ p["wmu"] + p["bmu"]
    logsigma = jax.nn.relu(t @ p["wls"] + p["bls"])
    return mu, logsigma


if __name__ == "__main__":
    input_size, hidden_size, output_size = 32, 64, 16
    batch = 8

    key = jax.random.PRNGKey(0)
    kx, kp, kb = jax.random.split(key, 3)
    params = init_params(kp, input_size, hidden_size, output_size)
    tpu_params = fuse_and_pad_params(params)

    # --- small-batch strict f32 check (module-sized problem) ---
    x = jax.random.normal(kx, (batch, input_size), dtype=jnp.float32)
    mu, logsigma = dblock_relu(x, tpu_params)
    jax.block_until_ready((mu, logsigma))
    mu_ref, ls_ref = dblock_relu_ref(x, params)
    assert mu.shape == (batch, output_size) and logsigma.shape == (batch, output_size)
    assert jnp.allclose(mu, mu_ref, atol=1e-5, rtol=1e-5)
    assert jnp.allclose(logsigma, ls_ref, atol=1e-5, rtol=1e-5)
    assert jnp.all(logsigma >= 0.0)

    # --- larger batch: multi-tile grid exercises DMA pipelining / megacore path ---
    xb = jax.random.normal(kb, (1024, input_size), dtype=jnp.float32)
    mu_b, ls_b = dblock_relu(xb, tpu_params, block_b=256)
    jax.block_until_ready((mu_b, ls_b))
    mu_bref, ls_bref = dblock_relu_ref(xb, params)
    assert jnp.allclose(mu_b, mu_bref, atol=1e-4, rtol=1e-4)
    assert jnp.allclose(ls_b, ls_bref, atol=1e-4, rtol=1e-4)

    # --- bf16 weights/activations (v6e/v7x fast path), f32 accumulate, loose tol ---
    tpu_params_bf16 = fuse_and_pad_params(params, compute_dtype=jnp.bfloat16)
    mu_h, ls_h = dblock_relu(xb, tpu_params_bf16, block_b=256)
    jax.block_until_ready((mu_h, ls_h))
    assert jnp.allclose(mu_h, mu_bref, atol=5e-2, rtol=5e-2)
    assert jnp.allclose(ls_h, ls_bref, atol=5e-2, rtol=5e-2)

    print("KERNEL_OK")
</pallas_src>

<mosaic_0001>
module attributes {stable_mosaic.version = 11 : i64} {
  func.func @dblock_relu_kernel(%arg0: i32, %arg1: memref<8x32xf32, #tpu.memory_space<vmem>>, %arg2: memref<32x128xf32, #tpu.memory_space<vmem>>, %arg3: memref<1x128xf32, #tpu.memory_space<vmem>>, %arg4: memref<128x128xf32, #tpu.memory_space<vmem>>, %arg5: memref<1x128xf32, #tpu.memory_space<vmem>>, %arg6: memref<128x32xf32, #tpu.memory_space<vmem>>, %arg7: memref<1x32xf32, #tpu.memory_space<vmem>>, %arg8: memref<8x32xf32, #tpu.memory_space<vmem>>) attributes {dimension_semantics = [#tpu.dimension_semantics<parallel>], iteration_bounds = array<i64: 1>, scalar_prefetch = 0 : i64, scratch_operands = 0 : i64, tpu.core_type = #tpu.core_type<tc>, window_params = [{transform_indices = @transform_0, window_bounds = array<i64: 8, 32>}, {pipeline_mode = #tpu.pipeline_mode<synchronous>, transform_indices = @transform_1, window_bounds = array<i64: 32, 128>}, {pipeline_mode = #tpu.pipeline_mode<synchronous>, transform_indices = @transform_2, window_bounds = array<i64: 1, 128>}, {pipeline_mode = #tpu.pipeline_mode<synchronous>, transform_indices = @transform_3, window_bounds = array<i64: 128, 128>}, {pipeline_mode = #tpu.pipeline_mode<synchronous>, transform_indices = @transform_4, window_bounds = array<i64: 1, 128>}, {pipeline_mode = #tpu.pipeline_mode<synchronous>, transform_indices = @transform_5, window_bounds = array<i64: 128, 32>}, {pipeline_mode = #tpu.pipeline_mode<synchronous>, transform_indices = @transform_6, window_bounds = array<i64: 1, 32>}, {transform_indices = @transform_7, window_bounds = array<i64: 8, 32>}]} {
    %c0 = arith.constant 0 : index
    %c0_0 = arith.constant 0 : index
    %0 = vector.load %arg1[%c0, %c0_0] : memref<8x32xf32, #tpu.memory_space<vmem>>, vector<8x32xf32>
    %c0_1 = arith.constant 0 : index
    %c0_2 = arith.constant 0 : index
    %1 = vector.load %arg2[%c0_1, %c0_2] : memref<32x128xf32, #tpu.memory_space<vmem>>, vector<32x128xf32>
    %cst = arith.constant dense<0.000000e+00> : vector<8x128xf32>
    %2 = tpu.matmul %0, %1, %cst {dimension_numbers = #tpu.dot_dimension_numbers<[1], [0], [0], [1], [0, 0, 1, 1], [], []>} : vector<8x32xf32>, vector<32x128xf32>, vector<8x128xf32> -> vector<8x128xf32>
    %c0_3 = arith.constant 0 : index
    %c0_4 = arith.constant 0 : index
    %3 = vector.load %arg3[%c0_3, %c0_4] : memref<1x128xf32, #tpu.memory_space<vmem>>, vector<1x128xf32>
    %4 = vector.broadcast %3 : vector<1x128xf32> to vector<8x128xf32>
    %5 = arith.addf %2, %4 : vector<8x128xf32>
    %cst_5 = arith.constant 0.000000e+00 : f32
    %6 = vector.broadcast %cst_5 : f32 to vector<8x128xf32>
    %7 = arith.maximumf %5, %6 : vector<8x128xf32>
    %c0_6 = arith.constant 0 : index
    %c0_7 = arith.constant 0 : index
    %8 = vector.load %arg4[%c0_6, %c0_7] : memref<128x128xf32, #tpu.memory_space<vmem>>, vector<128x128xf32>
    %cst_8 = arith.constant dense<0.000000e+00> : vector<8x128xf32>
    %9 = tpu.matmul %7, %8, %cst_8 {dimension_numbers = #tpu.dot_dimension_numbers<[1], [0], [0], [1], [0, 0, 1, 1], [], []>} : vector<8x128xf32>, vector<128x128xf32>, vector<8x128xf32> -> vector<8x128xf32>
    %c0_9 = arith.constant 0 : index
    %c0_10 = arith.constant 0 : index
    %10 = vector.load %arg5[%c0_9, %c0_10] : memref<1x128xf32, #tpu.memory_space<vmem>>, vector<1x128xf32>
    %11 = vector.broadcast %10 : vector<1x128xf32> to vector<8x128xf32>
    %12 = arith.addf %9, %11 : vector<8x128xf32>
    %cst_11 = arith.constant 0.000000e+00 : f32
    %13 = vector.broadcast %cst_11 : f32 to vector<8x128xf32>
    %14 = arith.maximumf %12, %13 : vector<8x128xf32>
    %c0_12 = arith.constant 0 : index
    %c0_13 = arith.constant 0 : index
    %15 = vector.load %arg6[%c0_12, %c0_13] : memref<128x32xf32, #tpu.memory_space<vmem>>, vector<128x32xf32>
    %cst_14 = arith.constant dense<0.000000e+00> : vector<8x32xf32>
    %16 = tpu.matmul %14, %15, %cst_14 {dimension_numbers = #tpu.dot_dimension_numbers<[1], [0], [0], [1], [0, 0, 1, 1], [], []>} : vector<8x128xf32>, vector<128x32xf32>, vector<8x32xf32> -> vector<8x32xf32>
    %c0_15 = arith.constant 0 : index
    %c0_16 = arith.constant 0 : index
    %17 = vector.load %arg7[%c0_15, %c0_16] : memref<1x32xf32, #tpu.memory_space<vmem>>, vector<1x32xf32>
    %18 = vector.broadcast %17 : vector<1x32xf32> to vector<8x32xf32>
    %19 = arith.addf %16, %18 : vector<8x32xf32>
    %20 = tpu.iota {dimensions = array<i32: 1>} : vector<8x32xi32>
    %c16_i32 = arith.constant 16 : i32
    %21 = vector.broadcast %c16_i32 : i32 to vector<8x32xi32>
    %22 = arith.cmpi slt, %20, %21 : vector<8x32xi32>
    %cst_17 = arith.constant 0.000000e+00 : f32
    %23 = vector.broadcast %cst_17 : f32 to vector<8x32xf32>
    %24 = arith.maximumf %19, %23 : vector<8x32xf32>
    %25 = arith.select %22, %19, %24 : vector<8x32xi1>, vector<8x32xf32>
    %c0_18 = arith.constant 0 : index
    %c0_19 = arith.constant 0 : index
    %26 = vector.load %arg8[%c0_18, %c0_19] : memref<8x32xf32, #tpu.memory_space<vmem>>, vector<8x32xf32>
    tpu.vector_store %arg8[%c0_18, %c0_19], %25 {strides = array<i32>} : memref<8x32xf32, #tpu.memory_space<vmem>>, vector<8x32xf32>,
    return
  }
  func.func @transform_0(%arg0: i32) -> (i32, i32) {
    %c0_i32 = arith.constant 0 : i32
    %c0_i32_0 = arith.constant 0 : i32
    return %arg0, %c0_i32 : i32, i32
  }
  func.func @transform_1(%arg0: i32) -> (i32, i32) {
    %c0_i32 = arith.constant 0 : i32
    %c0_i32_0 = arith.constant 0 : i32
    %c0_i32_1 = arith.constant 0 : i32
    return %c0_i32, %c0_i32_0 : i32, i32
  }
  func.func @transform_2(%arg0: i32) -> (i32, i32) {
    %c0_i32 = arith.constant 0 : i32
    %c0_i32_0 = arith.constant 0 : i32
    %c0_i32_1 = arith.constant 0 : i32
    return %c0_i32, %c0_i32_0 : i32, i32
  }
  func.func @transform_3(%arg0: i32) -> (i32, i32) {
    %c0_i32 = arith.constant 0 : i32
    %c0_i32_0 = arith.constant 0 : i32
    %c0_i32_1 = arith.constant 0 : i32
    return %c0_i32, %c0_i32_0 : i32, i32
  }
  func.func @transform_4(%arg0: i32) -> (i32, i32) {
    %c0_i32 = arith.constant 0 : i32
    %c0_i32_0 = arith.constant 0 : i32
    %c0_i32_1 = arith.constant 0 : i32
    return %c0_i32, %c0_i32_0 : i32, i32
  }
  func.func @transform_5(%arg0: i32) -> (i32, i32) {
    %c0_i32 = arith.constant 0 : i32
    %c0_i32_0 = arith.constant 0 : i32
    %c0_i32_1 = arith.constant 0 : i32
    return %c0_i32, %c0_i32_0 : i32, i32
  }
  func.func @transform_6(%arg0: i32) -> (i32, i32) {
    %c0_i32 = arith.constant 0 : i32
    %c0_i32_0 = arith.constant 0 : i32
    %c0_i32_1 = arith.constant 0 : i32
    return %c0_i32, %c0_i32_0 : i32, i32
  }
  func.func @transform_7(%arg0: i32) -> (i32, i32) {
    %c0_i32 = arith.constant 0 : i32
    %c0_i32_0 = arith.constant 0 : i32
    return %arg0, %c0_i32 : i32, i32
  }
}

</mosaic_0001>

<llo_original>
// kernel: tpu_custom_call.1
$region0: #{tpu_custom_call.1}
  #allocation0 [shape = 'u32[]', space=smem, size = 0x4, offset = 0x4, fixed_abs, tag = 'smem constant byte address 0x4 - core index']
  #allocation1 [shape = 'u32[72,128]{1,0:T(1,128)}', space=vmem, size = 0x9000, scoped, tag = 'internal scratch']
  %s0 = inlined_call_operand.hbm [shape: f32[8,32], index: 0, kind: input, shape index: {}]
  %s1 = inlined_call_operand.vmem [shape: f32[32,128], index: 1, kind: input, shape index: {}]
  %s2 = inlined_call_operand.vmem [shape: f32[1,128], index: 2, kind: input, shape index: {}]
  %s3 = inlined_call_operand.vmem [shape: f32[128,128], index: 3, kind: input, shape index: {}]
  %s4 = inlined_call_operand.vmem [shape: f32[1,128], index: 4, kind: input, shape index: {}]
  %s5 = inlined_call_operand.vmem [shape: f32[128,32], index: 5, kind: input, shape index: {}]
  %s6 = inlined_call_operand.vmem [shape: f32[1,32], index: 6, kind: input, shape index: {}]
  %s7 = inlined_call_operand.hbm [shape: f32[8,32], index: 7, kind: output, shape index: {}]
  %s8 = sld [smem:[#allocation0]]
  $region42: #{tpu_custom_call.1} parent=0
    _
  %s10 = ssub.s32 1, %s8
  %s11 = scalar_select 0, %s10, %s8
  $region1: #{tpu_custom_call.1} parent=0
    #allocation2 [shape = 'u8[4096]{0}', space=vmem, size = 0x1000, scoped, tag = 'input window, operand 0, single buffered']
    #allocation3 [shape = 's32[1]{0}', space=sflag, size = 0x4, scoped, tag = 'scoped memory for tpu_custom_call.1']
    #allocation4 [shape = 's32[1]{0}', space=sflag, size = 0x4, scoped, tag = 'scoped memory for tpu_custom_call.1']
    #allocation5 [shape = 'u8[4096]{0}', space=vmem, size = 0x1000, scoped, tag = 'output window, operand 0, single buffered']
    %12 = vsyncpa [#allocation3], 0
    %13 = vsyncpa [#allocation4], 0
    // Predicated region
    $region2: #{tpu_custom_call.1} parent=1 // pred_check
      _
    $region3: #{tpu_custom_call.1} parent=1 // pred_check_branch
      %15 = sbr.rel (0) target = $region5
    $region4: #{tpu_custom_call.1} parent=1 // pred_region
      %17 = vsyncadd [#allocation3], 0
      %s19 = sshll.u32 %s0, 4
      %s20 = int_to_ptr.hbm [resolvable:$true] %s19
      %s21 = sshll.u32 [#allocation2], 4
      %s22 = int_to_ptr.vmem [resolvable:$true] %s21
      %24 = dma.hbm_to_vmem [thread:$0]  %s20, 128, %s22, [#allocation3]
    $region5: #{tpu_custom_call.1} parent=1 // pred_fallthru
      _
    // Predicated region
    $region6: #{tpu_custom_call.1} parent=1 // pred_check
      _
    $region7: #{tpu_custom_call.1} parent=1 // pred_check_branch
      %26 = sbr.rel (0) target = $region9
    $region8: #{tpu_custom_call.1} parent=1 // pred_region
      _
    $region9: #{tpu_custom_call.1} parent=1 // pred_fallthru
      _
    // Predicated region
    $region10: #{tpu_custom_call.1} parent=1 // pred_check
      _
    $region11: #{tpu_custom_call.1} parent=1 // pred_check_branch
      %28 = sbr.rel (0) target = $region13
    $region12: #{tpu_custom_call.1} parent=1 // pred_region
      _
    $region13: #{tpu_custom_call.1} parent=1 // pred_fallthru
      _
    // Predicated region
    $region14: #{tpu_custom_call.1} parent=1 // pred_check
      _
    $region15: #{tpu_custom_call.1} parent=1 // pred_check_branch
      %30 = sbr.rel (0) target = $region17
    $region16: #{tpu_custom_call.1} parent=1 // pred_region
      _
    $region17: #{tpu_custom_call.1} parent=1 // pred_fallthru
      _
    // Predicated region
    $region18: #{tpu_custom_call.1} parent=1 // pred_check
      _
    $region19: #{tpu_custom_call.1} parent=1 // pred_check_branch
      %32 = sbr.rel (0) target = $region21
    $region20: #{tpu_custom_call.1} parent=1 // pred_region
      _
    $region21: #{tpu_custom_call.1} parent=1 // pred_fallthru
      _
    // Predicated region
    $region22: #{tpu_custom_call.1} parent=1 // pred_check
      _
    $region23: #{tpu_custom_call.1} parent=1 // pred_check_branch
      %34 = sbr.rel (0) target = $region25
    $region24: #{tpu_custom_call.1} parent=1 // pred_region
      _
    $region25: #{tpu_custom_call.1} parent=1 // pred_fallthru
      _
    // Predicated region
    $region26: #{tpu_custom_call.1} parent=1 // pred_check
      _
    $region27: #{tpu_custom_call.1} parent=1 // pred_check_branch
      %36 = sbr.rel (0) target = $region29
    $region28: #{tpu_custom_call.1} parent=1 // pred_region
      _
    $region29: #{tpu_custom_call.1} parent=1 // pred_fallthru
      _
    // Predicated region
    $region30: #{tpu_custom_call.1} parent=1 // pred_check
      _
    $region31: #{tpu_custom_call.1} parent=1 // pred_check_branch
      %38 = sbr.rel (0) target = $region33
    $region32: #{tpu_custom_call.1} parent=1 // pred_region
      %40 = dma.done [#allocation3], 128
    $region33: #{tpu_custom_call.1} parent=1 // pred_fallthru
      _
    %v41 = vld [vmem:[#allocation2] sm:$0xff]
    %v42 = vld [vmem:[%s1] sm:$0xff]
    %v43 = vld [vmem:[%s1 + $0x8] sm:$0xff]
    %v44 = vld [vmem:[%s1 + $0x10] sm:$0xff]
    %v45 = vld [vmem:[%s1 + $0x18] sm:$0xff]
    %v46 = vld [vmem:[%s2] sm:$0x1]
    %v48 = vperm.slane %v46, 0
    %vm50 = vcmask 261120
    %v52 = vsel %vm50, %v41, 0
    %54 = vmatpush.msra.mxu0 0.0
    %55 = vmatpush.msra.mxu0 0.0
    %56 = vmatpush.msra.mxu0 0.0
    %57 = vmatpush.msra.mxu0 0.0
    %58 = vmatpush.msra.mxu0 0.0
    %59 = vmatpush.msra.mxu0 0.0
    %60 = vmatpush.msra.mxu0 0.0
    %61 = vmatpush.msra.mxu0 0.0
    %62 = vmatpush.msra.mxu0 0.0
    %63 = vmatpush.msra.mxu0 0.0
    %64 = vmatpush.msra.mxu0 0.0
    %65 = vmatpush.msra.mxu0 0.0
    %66 = vmatpush.msra.mxu0 %v45
    %67 = vmatpush.msra.mxu0 %v44
    %68 = vmatpush.msra.mxu0 %v43
    %69 = vmatpush.msra.mxu0 %v42
    %70 = vmatmul.f32.gmra.mxu0 %v52
    %v71 = vpop.f32.mrf.mxu0
    %v72 = vadd.f32 %v48, %v71
    %73 = vdwg.mxu0
    %v74 = vmax.f32 %v72, 0.0
    %v75 = vld [vmem:[%s3] sm:$0xff]
    %v76 = vld [vmem:[%s3 + $0x8] sm:$0xff]
    %v77 = vld [vmem:[%s3 + $0x10] sm:$0xff]
    %v78 = vld [vmem:[%s3 + $0x18] sm:$0xff]
    %v79 = vld [vmem:[%s3 + $0x20] sm:$0xff]
    %v80 = vld [vmem:[%s3 + $0x28] sm:$0xff]
    %v81 = vld [vmem:[%s3 + $0x30] sm:$0xff]
    %v82 = vld [vmem:[%s3 + $0x38] sm:$0xff]
    %v83 = vld [vmem:[%s3 + $0x40] sm:$0xff]
    %v84 = vld [vmem:[%s3 + $0x48] sm:$0xff]
    %v85 = vld [vmem:[%s3 + $0x50] sm:$0xff]
    %v86 = vld [vmem:[%s3 + $0x58] sm:$0xff]
    %v87 = vld [vmem:[%s3 + $0x60] sm:$0xff]
    %v88 = vld [vmem:[%s3 + $0x68] sm:$0xff]
    %v89 = vld [vmem:[%s3 + $0x70] sm:$0xff]
    %v90 = vld [vmem:[%s3 + $0x78] sm:$0xff]
    %v91 = vld [vmem:[%s4] sm:$0x1]
    %v93 = vperm.slane %v91, 0
    %95 = vmatpush.msra.mxu0 %v90
    %96 = vmatpush.msra.mxu0 %v89
    %97 = vmatpush.msra.mxu0 %v88
    %98 = vmatpush.msra.mxu0 %v87
    %99 = vmatpush.msra.mxu0 %v86
    %100 = vmatpush.msra.mxu0 %v85
    %101 = vmatpush.msra.mxu0 %v84
    %102 = vmatpush.msra.mxu0 %v83
    %103 = vmatpush.msra.mxu0 %v82
    %104 = vmatpush.msra.mxu0 %v81
    %105 = vmatpush.msra.mxu0 %v80
    %106 = vmatpush.msra.mxu0 %v79
    %107 = vmatpush.msra.mxu0 %v78
    %108 = vmatpush.msra.mxu0 %v77
    %109 = vmatpush.msra.mxu0 %v76
    %110 = vmatpush.msra.mxu0 %v75
    %111 = vmatmul.f32.gmra.mxu0 %v74
    %v112 = vpop.f32.mrf.mxu0
    %v113 = vadd.f32 %v93, %v112
    %114 = vdwg.mxu0
    %v115 = vmax.f32 %v113, 0.0
    %v116 = vld [vmem:[%s5] sm:$0xff]
    %v117 = vld [vmem:[%s5 + $0x8] sm:$0xff]
    %v118 = vld [vmem:[%s5 + $0x10] sm:$0xff]
    %v119 = vld [vmem:[%s5 + $0x18] sm:$0xff]
    %v120 = vld [vmem:[%s5 + $0x20] sm:$0xff]
    %v121 = vld [vmem:[%s5 + $0x28] sm:$0xff]
    %v122 = vld [vmem:[%s5 + $0x30] sm:$0xff]
    %v123 = vld [vmem:[%s5 + $0x38] sm:$0xff]
    %v124 = vld [vmem:[%s5 + $0x40] sm:$0xff]
    %v125 = vld [vmem:[%s5 + $0x48] sm:$0xff]
    %v126 = vld [vmem:[%s5 + $0x50] sm:$0xff]
    %v127 = vld [vmem:[%s5 + $0x58] sm:$0xff]
    %v128 = vld [vmem:[%s5 + $0x60] sm:$0xff]
    %v129 = vld [vmem:[%s5 + $0x68] sm:$0xff]
    %v130 = vld [vmem:[%s5 + $0x70] sm:$0xff]
    %v131 = vld [vmem:[%s5 + $0x78] sm:$0xff]
    %v132 = vld [vmem:[%s6] sm:$0x1]
    %v134 = vperm.slane %v132, 0
    %136 = vmatpush.msra.mxu0 %v131
    %137 = vmatpush.msra.mxu0 %v130
    %138 = vmatpush.msra.mxu0 %v129
    %139 = vmatpush.msra.mxu0 %v128
    %140 = vmatpush.msra.mxu0 %v127
    %141 = vmatpush.msra.mxu0 %v126
    %142 = vmatpush.msra.mxu0 %v125
    %143 = vmatpush.msra.mxu0 %v124
    %144 = vmatpush.msra.mxu0 %v123
    %145 = vmatpush.msra.mxu0 %v122
    %146 = vmatpush.msra.mxu0 %v121
    %147 = vmatpush.msra.mxu0 %v120
    %148 = vmatpush.msra.mxu0 %v119
    %149 = vmatpush.msra.mxu0 %v118
    %150 = vmatpush.msra.mxu0 %v117
    %151 = vmatpush.msra.mxu0 %v116
    %152 = vmatmul.f32.gmra.mxu0 %v115
    %v153 = vpop.f32.mrf.mxu0
    %v154 = vadd.f32 %v134, %v153
    %155 = vdwg.mxu0
    %v156 = vlaneseq
    %v157 = vand.u32 %v156, 127
    %vm158 = vcmp.lt.s32.totalorder %v157, 16
    %v159 = vmax.f32 %v154, 0.0
    %v160 = vsel %vm158, %v154, %v159
    %161 = vst.msk [vmem:[#allocation5] sm:$0xff] %vm50, %v160
    // Predicated region
    $region34: #{tpu_custom_call.1} parent=1 // pred_check
      _
    $region35: #{tpu_custom_call.1} parent=1 // pred_check_branch
      %163 = sbr.rel (0) target = $region37
    $region36: #{tpu_custom_call.1} parent=1 // pred_region
      %165 = vsyncadd [#allocation4], 0
      %s167 = sshll.u32 [#allocation5], 4
      %s168 = int_to_ptr.vmem [resolvable:$true] %s167
      %s169 = sshll.u32 %s7, 4
      %s170 = int_to_ptr.hbm [resolvable:$true] %s169
      %172 = dma.vmem_to_hbm [thread:$0]  %s168, 128, %s170, [#allocation4]
    $region37: #{tpu_custom_call.1} parent=1 // pred_fallthru
      _
    // Predicated region
    $region38: #{tpu_custom_call.1} parent=1 // pred_check
      _
    $region39: #{tpu_custom_call.1} parent=1 // pred_check_branch
      %174 = sbr.rel (0) target = $region41
    $region40: #{tpu_custom_call.1} parent=1 // pred_region
      %176 = dma.done [#allocation4], 128
    $region41: #{tpu_custom_call.1} parent=1 // pred_fallthru
      _
    %177 = vsyncpa [#allocation3], 1
    %178 = vsyncpa [#allocation4], 1

</llo_original>
